<compile_context>
chip_gen: v6e
topology: v6e:2x2x1
jax: 0.10.0
libtpu: 0.0.40
codegen_flags: <defaults>
</compile_context>

<pallas_src>
import functools

import jax
import jax.numpy as jnp
from jax import lax
from jax.experimental import pallas as pl
from jax.experimental.pallas import tpu as pltpu

# bce_with_logits(_PAD_LOGIT, 1.0) == 0 exactly in f32, so padded elements
# (rare fallback path only) contribute nothing to the loss sum.
_PAD_LOGIT = 100.0


def _bce_terms(x, t):
    """Stable BCE-with-logits terms: max(x,0) - x*t + log1p(exp(-|x|))."""
    x = x.astype(jnp.float32)
    t = t.astype(jnp.float32)
    return jnp.maximum(x, 0.0) - x * t + jnp.log1p(jnp.exp(-jnp.abs(x)))


# ---------------------------------------------------------------------------
# Kernels
# ---------------------------------------------------------------------------
def _single_block_kernel(x_ref, t_ref, out_ref):
    # Whole problem in one VMEM block -> full reduction to a scalar in SMEM.
    out_ref[0, 0] = jnp.sum(_bce_terms(x_ref[...], t_ref[...]))


def _make_tiled_kernel(n_bands, ncols, blocks_per_chunk, n_blocks,
                       gate_overflow, unroll):
    """Grid (n_chunks, blocks_per_chunk). Each step reduces a (8*n_bands, ncols)
    tile into its chunk's VMEM-resident (8, ncols) f32 accumulator."""

    def kernel(x_ref, t_ref, out_ref):
        c = pl.program_id(0)
        i = pl.program_id(1)

        @pl.when(i == 0)
        def _init():
            out_ref[...] = jnp.zeros_like(out_ref)

        def band(k, acc):
            r0 = pl.multiple_of(k * 8, 8)
            xb = x_ref[pl.ds(r0, 8), :]
            tb = t_ref[pl.ds(r0, 8), :]
            return acc + _bce_terms(xb, tb)

        acc = lax.fori_loop(0, n_bands, band,
                            jnp.zeros((8, ncols), jnp.float32),
                            unroll=unroll)

        if gate_overflow:
            # blocks_per_chunk * n_chunks > n_blocks: the trailing step(s) of
            # the last chunk re-read a clamped block; skip their accumulation.
            @pl.when(c * blocks_per_chunk + i < n_blocks)
            def _acc():
                out_ref[...] += acc
        else:
            out_ref[...] += acc

    return kernel


# ---------------------------------------------------------------------------
# Wrapper
# ---------------------------------------------------------------------------
@functools.lru_cache(maxsize=1)
def _device_defaults():
    """(tile_bytes_per_input, n_chunks) chosen per TPU generation."""
    kind = ""
    try:
        dev = jax.devices()[0]
        if dev.platform == "tpu":
            kind = dev.device_kind.lower()
    except Exception:
        pass
    if "v6" in kind or "trillium" in kind:
        return 4 << 20, 1          # 1 TensorCore, 32 MiB scoped-VMEM default
    if "7" in kind:
        # TODO(synk): on v7x verify in the trace that the leading "parallel"
        # axis is split across the 2 TensorCores; if not, use pltpu.CORE_PARALLEL.
        return 4 << 20, 2          # 2 TensorCores, 3.2 TB/s HBM
    return 2 << 20, 1              # v5e / unknown: 16 MiB scoped-VMEM default


def wrapped_bce_loss(inputs, targets, reduce=True, *,
                     block_rows=None, n_chunks=None, tile_bytes=None,
                     max_single_bytes=4 << 20):
    """Mean BCE-with-logits; matches WrappedBCELoss.forward (the `reduce` flag
    is accepted but ignored, exactly like the reference module)."""
    del reduce
    assert inputs.shape == targets.shape, (inputs.shape, targets.shape)
    total = int(inputs.size)
    if total == 0:
        return jnp.float32(jnp.nan)  # torch mean over empty tensor

    dflt_tile, dflt_chunks = _device_defaults()
    tile_bytes = dflt_tile if tile_bytes is None else int(tile_bytes)
    n_chunks = dflt_chunks if n_chunks is None else int(n_chunks)
    itemsize = max(inputs.dtype.itemsize, targets.dtype.itemsize)

    # ---- pick a copy-free 2-D view ----------------------------------------
    ncols = next((c for c in (512, 256, 128) if total % c == 0), None)
    if ncols is None:
        ncols = int(inputs.shape[-1]) if inputs.ndim >= 2 else total
    rows = total // ncols
    x2 = inputs.reshape(rows, ncols)   # free (bitcast) reshape, no copy
    t2 = targets.reshape(rows, ncols)

    cols_padded = -(-ncols // 128) * 128
    rows_padded = -(-rows // 8) * 8
    fast = 2 * rows_padded * cols_padded * itemsize <= max_single_bytes

    # ---- rare fallback: pad with zero-loss (logit=+100, target=1) pairs ----
    if not fast and (rows < 8 or cols_padded * 8 * itemsize > tile_bytes):
        pad = (-total) % 128
        xf = jnp.pad(inputs.reshape(-1), (0, pad), constant_values=_PAD_LOGIT)
        tf = jnp.pad(targets.reshape(-1), (0, pad), constant_values=1.0)
        rows, ncols, cols_padded = (total + pad) // 128, 128, 128
        x2, t2 = xf.reshape(rows, ncols), tf.reshape(rows, ncols)

    # ---- fast path: one block, no grid / pipeline bookkeeping --------------
    if fast or rows < 8:
        s = pl.pallas_call(
            _single_block_kernel,
            out_shape=jax.ShapeDtypeStruct((1, 1), jnp.float32),
            in_specs=[pl.BlockSpec(memory_space=pltpu.MemorySpace.VMEM)] * 2,
            out_specs=pl.BlockSpec(memory_space=pltpu.MemorySpace.SMEM),
            compiler_params=pltpu.CompilerParams(vmem_limit_bytes=32 << 20),
        )(x2, t2)
        return s[0, 0] / jnp.float32(total)

    # ---- tiled path ---------------------------------------------------------
    if block_rows is None:
        block_rows = tile_bytes // (cols_padded * itemsize)
    block_rows = max(8, min((block_rows // 8) * 8, (rows // 8) * 8))
    n_blocks = rows // block_rows
    main_rows = n_blocks * block_rows
    n_chunks = max(1, min(n_chunks, n_blocks))
    bpc = -(-n_blocks // n_chunks)
    gate_overflow = bpc * n_chunks != n_blocks
    n_bands = block_rows // 8

    in_spec = pl.BlockSpec(
        (block_rows, ncols),
        lambda c, i: (jnp.minimum(c * bpc + i, n_blocks - 1), 0))
    # NOTE: if profiling shows exposed DMA between steps, add
    # `pipeline_mode=pl.Buffered(3)` to the input specs (re-check VMEM budget).

    partials = pl.pallas_call(
        _make_tiled_kernel(n_bands, ncols, bpc, n_blocks, gate_overflow,
                           unroll=min(8, n_bands)),
        out_shape=jax.ShapeDtypeStruct((n_chunks * 8, ncols), jnp.float32),
        grid_spec=pltpu.PrefetchScalarGridSpec(
            num_scalar_prefetch=0,
            grid=(n_chunks, bpc),
            in_specs=[in_spec, in_spec],
            out_specs=pl.BlockSpec((8, ncols), lambda c, i: (c, 0)),
        ),
        compiler_params=pltpu.CompilerParams(
            dimension_semantics=("parallel", "arbitrary")),
    )(x2, t2)

    loss_sum = jnp.sum(partials)
    if main_rows < rows:
        # Ragged tail (< one block): tiny plain-JAX epilogue -- avoids any
        # in-kernel masking and any padded copy of the big operands.
        loss_sum = loss_sum + jnp.sum(_bce_terms(x2[main_rows:, :],
                                                 t2[main_rows:, :]))
    # f32 accumulation; ~1e-5 relative drift vs f64 for very large inputs.
    return loss_sum / jnp.float32(total)


# ---------------------------------------------------------------------------
# Self-test
# ---------------------------------------------------------------------------
def _reference(x, t):
    return jnp.mean(_bce_terms(x, t))


if __name__ == "__main__":
    key = jax.random.PRNGKey(0)

    cases = [
        # (shape, dtype, kwargs) -- kwargs force specific code paths so every
        # branch is exercised regardless of which TPU generation runs the test.
        ((32, 64), jnp.float32, {}),                       # fast, lane-dense view
        ((7, 13), jnp.float32, {}),                        # fast, tiny odd shape
        ((517, 771), jnp.float32, {}),                     # fast, native odd view
        ((2048, 512), jnp.float32, {}),                    # tiled, device defaults
        ((1029, 512), jnp.float32,                         # tiled + ragged tail
         dict(max_single_bytes=0, block_rows=256)),
        ((1600, 512), jnp.float32,                         # tiled, 2 chunks + overflow
         dict(max_single_bytes=0, block_rows=512, n_chunks=2)),
        ((777, 51), jnp.float32,                           # tiled, native non-128 cols
         dict(max_single_bytes=0, block_rows=256, n_chunks=2)),
        ((13001,), jnp.float32,                            # rare pad-fallback (1-D odd)
         dict(max_single_bytes=0, block_rows=32)),
        ((128, 77), jnp.bfloat16, {}),                     # fast, bf16 inputs
    ]

    for shape, dtype, kwargs in cases:
        key, k1, k2 = jax.random.split(key, 3)
        x = (3.0 * jax.random.normal(k1, shape, dtype=jnp.float32)).astype(dtype)
        t = (jax.random.uniform(k2, shape) > 0.5).astype(dtype)
        got = wrapped_bce_loss(x, t, **kwargs)
        jax.block_until_ready(got)
        want = _reference(x, t)
        assert jnp.allclose(got, want, rtol=1e-4, atol=1e-6), (
            shape, str(dtype), float(got), float(want))

    print("KERNEL_OK")
</pallas_src>

<mosaic_0001>
module attributes {stable_mosaic.version = 11 : i64} {
  func.func @_single_block_kernel(%arg0: memref<4x512xf32, #tpu.memory_space<vmem>>, %arg1: memref<4x512xf32, #tpu.memory_space<vmem>>, %arg2: memref<1x1xf32, #tpu.memory_space<smem>>) attributes {dimension_semantics = [], scalar_prefetch = 0 : i64, scratch_operands = 0 : i64, tpu.core_type = #tpu.core_type<tc>} {
    %c0 = arith.constant 0 : index
    %c0_0 = arith.constant 0 : index
    %0 = vector.load %arg0[%c0, %c0_0] : memref<4x512xf32, #tpu.memory_space<vmem>>, vector<4x512xf32>
    %c0_1 = arith.constant 0 : index
    %c0_2 = arith.constant 0 : index
    %1 = vector.load %arg1[%c0_1, %c0_2] : memref<4x512xf32, #tpu.memory_space<vmem>>, vector<4x512xf32>
    %cst = arith.constant 0.000000e+00 : f32
    %2 = vector.broadcast %cst : f32 to vector<4x512xf32>
    %3 = arith.maximumf %0, %2 : vector<4x512xf32>
    %4 = arith.mulf %0, %1 : vector<4x512xf32>
    %5 = arith.subf %3, %4 : vector<4x512xf32>
    %6 = math.absf %0 : vector<4x512xf32>
    %cst_3 = arith.constant 0.000000e+00 : f32
    %7 = vector.broadcast %cst_3 : f32 to vector<4x512xf32>
    %8 = arith.subf %7, %6 : vector<4x512xf32>
    %9 = math.exp %8 : vector<4x512xf32>
    %10 = math.log1p %9 : vector<4x512xf32>
    %11 = arith.addf %5, %10 : vector<4x512xf32>
    %12 = vector.shape_cast %11 : vector<4x512xf32> to vector<1x4x512xf32>
    %cst_4 = arith.constant dense<0.000000e+00> : vector<1xf32>
    %13 = vector.multi_reduction <add>, %12, %cst_4 [1, 2] : vector<1x4x512xf32> to vector<1xf32>
    %14 = vector.shape_cast %13 : vector<1xf32> to vector<1x1x1xf32>
    %15 = vector.extract %14[0, 0, 0] : f32 from vector<1x1x1xf32>
    %c0_5 = arith.constant 0 : index
    %c0_6 = arith.constant 0 : index
    %16 = memref.load %arg2[%c0_5, %c0_6] : memref<1x1xf32, #tpu.memory_space<smem>>
    memref.store %15, %arg2[%c0_5, %c0_6] : memref<1x1xf32, #tpu.memory_space<smem>>
    return
  }
}

</mosaic_0001>

<llo_original>
// kernel: tpu_custom_call.1
$region0: #{tpu_custom_call.1}
  #allocation0 [shape = 'u32[]', space=smem, size = 0x4, offset = 0x4, fixed_abs, tag = 'smem constant byte address 0x4 - core index']
  #allocation1 [shape = 'u32[144,128]{1,0:T(1,128)}', space=vmem, size = 0x12000, scoped, tag = 'internal scratch']
  %s0 = inlined_call_operand.hbm [shape: f32[4,512], index: 0, kind: input, shape index: {}]
  %s1 = inlined_call_operand.hbm [shape: f32[4,512], index: 1, kind: input, shape index: {}]
  %s2 = inlined_call_operand.hbm [shape: f32[1,1], index: 2, kind: output, shape index: {}]
  %s3 = sld [smem:[#allocation0]]
  $region26: #{tpu_custom_call.1} parent=0
    _
  %s5 = ssub.s32 1, %s3
  %s6 = scalar_select 0, %s5, %s3
  $region1: #{tpu_custom_call.1} parent=0
    #allocation2 [shape = 'u8[8192]{0}', space=vmem, size = 0x2000, scoped, tag = 'input window, operand 0, single buffered']
    #allocation3 [shape = 's32[1]{0}', space=sflag, size = 0x4, scoped, tag = 'scoped memory for tpu_custom_call.1']
    #allocation4 [shape = 's32[1]{0}', space=sflag, size = 0x4, scoped, tag = 'scoped memory for tpu_custom_call.1']
    #allocation5 [shape = 'u8[8192]{0}', space=vmem, size = 0x2000, scoped, tag = 'input window, operand 1, single buffered']
    #allocation6 [shape = 's32[1]{0}', space=sflag, size = 0x4, scoped, tag = 'scoped memory for tpu_custom_call.1']
    #allocation7 [shape = 'u8[512]{0}', space=smem, size = 0x200, scoped, tag = 'output window, operand 0, single buffered']
    %7 = vsyncpa [#allocation3], 0
    %8 = vsyncpa [#allocation6], 0
    %9 = vsyncpa [#allocation4], 0
    // Predicated region
    $region2: #{tpu_custom_call.1} parent=1 // pred_check
      _
    $region3: #{tpu_custom_call.1} parent=1 // pred_check_branch
      %11 = sbr.rel (0) target = $region5
    $region4: #{tpu_custom_call.1} parent=1 // pred_region
      %s13 = ssub.s32 256, 256
      %14 = vsyncadd [#allocation3], %s13
      %s16 = sshll.u32 [#allocation2], 4
      %s17 = int_to_ptr.vmem [resolvable:$true] %s16
      %19 = dma.hbm_to_vmem [thread:$0]  %s0, 256, %s17, [#allocation3]
    $region5: #{tpu_custom_call.1} parent=1 // pred_fallthru
      _
    // Predicated region
    $region6: #{tpu_custom_call.1} parent=1 // pred_check
      _
    $region7: #{tpu_custom_call.1} parent=1 // pred_check_branch
      %21 = sbr.rel (0) target = $region9
    $region8: #{tpu_custom_call.1} parent=1 // pred_region
      %s23 = ssub.s32 256, 256
      %24 = vsyncadd [#allocation6], %s23
      %s26 = sshll.u32 [#allocation5], 4
      %s27 = int_to_ptr.vmem [resolvable:$true] %s26
      %29 = dma.hbm_to_vmem [thread:$0]  %s1, 256, %s27, [#allocation6]
    $region9: #{tpu_custom_call.1} parent=1 // pred_fallthru
      _
    // Predicated region
    $region10: #{tpu_custom_call.1} parent=1 // pred_check
      _
    $region11: #{tpu_custom_call.1} parent=1 // pred_check_branch
      %31 = sbr.rel (0) target = $region13
    $region12: #{tpu_custom_call.1} parent=1 // pred_region
      %32 = dma.done [#allocation3], 256
    $region13: #{tpu_custom_call.1} parent=1 // pred_fallthru
      _
    // Predicated region
    $region14: #{tpu_custom_call.1} parent=1 // pred_check
      _
    $region15: #{tpu_custom_call.1} parent=1 // pred_check_branch
      %34 = sbr.rel (0) target = $region17
    $region16: #{tpu_custom_call.1} parent=1 // pred_region
      %35 = dma.done [#allocation6], 256
    $region17: #{tpu_custom_call.1} parent=1 // pred_fallthru
      _
    %v36 = vld [vmem:[#allocation2] sm:$0xff]
    %v37 = vld [vmem:[#allocation2 + $0x8] sm:$0xff]
    %v38 = vld [vmem:[#allocation5] sm:$0xff]
    %v39 = vld [vmem:[#allocation5 + $0x8] sm:$0xff]
    %v40 = vmax.f32 %v36, 0.0
    %v41 = vmax.f32 %v37, 0.0
    %v42 = vmul.f32 %v36, %v38
    %v43 = vmul.f32 %v37, %v39
    %v44 = vsub.f32 %v40, %v42
    %v45 = vsub.f32 %v41, %v43
    %v46 = vand.u32 2147483647, %v36
    %v47 = vand.u32 2147483647, %v37
    %v48 = vsub.f32 0.0, %v46
    %v49 = vsub.f32 0.0, %v47
    %v50 = vmul.f32 %v48, 1.442695
    %v51 = vpow.pop %v50
    %v52 = vmul.f32 %v49, 1.442695
    %v53 = vpow.pop %v52
    %v54 = vadd.f32 %v51, 1.0
    %v55 = vlog2.pop %v54
    %v56 = vmul.f32 %v55, 0.6931472
    %v57 = vmul.f32 -0.5, %v51
    %v58 = vadd.f32 %v57, 1.0
    %v59 = vmul.f32 %v58, %v51
    %v60 = vand.u32 2147483647, %v51
    %vm61 = vcmp.lt.f32.partialorder %v60, 0.0004427343
    %v62 = vsel %vm61, %v59, %v56
    %v63 = vadd.f32 %v53, 1.0
    %v64 = vlog2.pop %v63
    %v65 = vmul.f32 %v64, 0.6931472
    %v66 = vmul.f32 -0.5, %v53
    %v67 = vadd.f32 %v66, 1.0
    %v68 = vmul.f32 %v67, %v53
    %v69 = vand.u32 2147483647, %v53
    %vm70 = vcmp.lt.f32.partialorder %v69, 0.0004427343
    %v71 = vsel %vm70, %v68, %v65
    %v72 = vadd.f32 %v44, %v62
    %v73 = vadd.f32 %v45, %v71
    %v76 = vcombine.high %v72, %v72
    %v77 = vcombine.high %v73, %v73
    %vm80 = vcmask 1043456
    %v81 = vsel %vm80, %v72, 0.0
    %v82 = vsel %vm80, %v76, 0.0
    %v83 = vadd.f32 %v81, %v82
    %v84 = vsel %vm80, %v73, 0.0
    %v85 = vadd.f32 %v83, %v84
    %v86 = vsel %vm80, %v77, 0.0
    %v87 = vadd.f32 %v85, %v86
    %88 = vadd.xlane.f32.xlu0 %v87
    %v89 = vpop.xlane.xlu0 %88
    %v90 = vrot.slane %v89, 4
    %v91 = vadd.f32 %v89, %v90
    %v92 = vrot.slane %v91, 2
    %v93 = vadd.f32 %v91, %v92
    %v94 = vrot.slane %v93, 1
    %v95 = vadd.f32 %v93, %v94
    %s96 = vtos %v95
    %s97 = scalar_lea.smem [#allocation7], 0
    %98 = sst [smem:[%s97]] %s96
    // Predicated region
    $region18: #{tpu_custom_call.1} parent=1 // pred_check
      _
    $region19: #{tpu_custom_call.1} parent=1 // pred_check_branch
      %100 = sbr.rel (0) target = $region21
    $region20: #{tpu_custom_call.1} parent=1 // pred_region
      %s102 = ssub.s32 16, 16
      %103 = vsyncadd [#allocation4], %s102
      %106 = dma.smem_to_hbm [#allocation7], 16, %s2, [#allocation4]
    $region21: #{tpu_custom_call.1} parent=1 // pred_fallthru
      _
    // Predicated region
    $region22: #{tpu_custom_call.1} parent=1 // pred_check
      _
    $region23: #{tpu_custom_call.1} parent=1 // pred_check_branch
      %108 = sbr.rel (0) target = $region25
    $region24: #{tpu_custom_call.1} parent=1 // pred_region
      %109 = dma.done [#allocation4], 16
    $region25: #{tpu_custom_call.1} parent=1 // pred_fallthru
      _
    %110 = sfence
    %111 = vsyncpa [#allocation3], 1
    %112 = vsyncpa [#allocation6], 1
    %113 = vsyncpa [#allocation4], 1

</llo_original>
